<compile_context>
chip_gen: v6e
topology: v6e:2x2x1
jax: 0.10.0
libtpu: 0.0.40
codegen_flags: <defaults>
</compile_context>

<pallas_src>
import functools

import jax
import jax.numpy as jnp
from jax.experimental import pallas as pl
from jax.experimental.pallas import tpu as pltpu


def _round_up(x, m):
    return ((x + m - 1) // m) * m


def _cdiv(a, b):
    return -(-a // b)


def _cwd_loss_kernel(s_ref, t_ref, out_ref, *, norm_type, divergence,
                     temperature, rows):
    """Each grid step writes its scalar partial sum at [0,0] of an (8,128) tile."""
    block_rows, hw = s_ref.shape
    i = pl.program_id(0)

    s = s_ref[...]
    t = t_ref[...]

    # Ragged row tail: a block may extend past `rows` (or, for 'none', past the
    # first-batch rows).  Sanitize those rows with the neutral value 1.0 BEFORE any
    # exp/log so they contribute exactly 0 in every branch and garbage bits in the
    # out-of-bounds region never reach the transcendentals.
    if rows % block_rows != 0:
        row_idx = jax.lax.broadcasted_iota(jnp.int32, (block_rows, hw), 0)
        valid = (i * block_rows + row_idx) < rows
        one = jnp.ones((), dtype=s.dtype)
        s = jnp.where(valid, s, one)
        t = jnp.where(valid, t, one)

    inv_T = 1.0 / float(temperature)

    if norm_type == "channel":
        # Row max on the native dtype (defers the f32 upcast); since 1/T > 0,
        # max(x * 1/T) == max(x) * 1/T.
        s_max = jnp.max(s, axis=-1, keepdims=True).astype(jnp.float32) * inv_T
        t_max = jnp.max(t, axis=-1, keepdims=True).astype(jnp.float32) * inv_T
        s_c = s.astype(jnp.float32) * inv_T - s_max
        t_c = t.astype(jnp.float32) * inv_T - t_max
        s_exp = jnp.exp(s_c)
        t_exp = jnp.exp(t_c)
        s_den = jnp.sum(s_exp, axis=-1, keepdims=True)
        t_den = jnp.sum(t_exp, axis=-1, keepdims=True)
        if divergence == "kl":
            # KLDivLoss(reduction='sum')(log_softmax(s/T), softmax(t/T))
            log_s = s_c - jnp.log(s_den)
            log_t = t_c - jnp.log(t_den)
            soft_t = t_exp / t_den
            contrib = soft_t * (log_t - log_s)
        else:  # mse
            contrib = (s_exp / s_den - t_exp / t_den) ** 2
        total = jnp.sum(contrib)

    elif norm_type == "channel_mean":
        scale = inv_T / float(hw)
        sm = jnp.sum(s.astype(jnp.float32), axis=-1, keepdims=True) * scale
        tm = jnp.sum(t.astype(jnp.float32), axis=-1, keepdims=True) * scale
        if divergence == "kl":
            v = tm * (jnp.log(tm) - jnp.log(sm))
        else:
            v = (sm - tm) ** 2
        total = jnp.sum(v)

    else:  # norm_type == 'none': identity norm on preds[0]; no /T in normalization.
        s32 = s.astype(jnp.float32)
        t32 = t.astype(jnp.float32)
        if divergence == "kl":
            # torch: norm_s = preds_S[0].log(); KLDivLoss => t * (log t - log s)
            contrib = t32 * (jnp.log(t32) - jnp.log(s32))
        else:
            contrib = (s32 - t32) ** 2
        total = jnp.sum(contrib)

    # Tiny lane-dense output tile; the scalar partial sits at [0, 0].
    subl = jax.lax.broadcasted_iota(jnp.int32, (8, 128), 0)
    lane = jax.lax.broadcasted_iota(jnp.int32, (8, 128), 1)
    out_ref[0] = jnp.where((subl == 0) & (lane == 0),
                           total.astype(jnp.float32), jnp.float32(0.0))


def criterion_cwd(preds_S, preds_T, norm_type="none", divergence="mse",
                  temperature=1.0):
    """JAX/Pallas equivalent of CriterionCWD(norm_type, divergence, temperature)."""
    n, c, h, w = preds_S.shape
    hw = h * w

    # Matches the torch module: temperature only takes effect for the 'kl' criterion.
    if divergence != "kl":
        temperature = 1.0

    if norm_type == "spatial":
        # TODO(synk): nn.Softmax(dim=1) (softmax over the channel dim) variant not
        # implemented.
        raise NotImplementedError("norm_type='spatial' not implemented")

    # Lane-dense 2D slabs; contiguous reshape only (no HBM copy, no host jnp.pad).
    s2 = preds_S.reshape(n * c, hw)
    t2 = preds_T.reshape(n * c, hw)
    if norm_type in ("channel", "channel_mean"):
        rows = n * c
        divisor = n * c
    else:  # 'none': torch only uses preds[0]; restrict the grid to the first c rows
        #         instead of materializing a sliced copy in HBM.
        rows = c
        divisor = n * h * w

    itemsize = jnp.dtype(s2.dtype).itemsize
    sub = 8 * max(1, 4 // itemsize)   # sublane tile: 8 (f32) / 16 (bf16) / 32 (i8)

    # --- hardware query: VMEM capacity + TensorCore count ---
    vmem_cap = 64 << 20               # conservative (v7x-sized) fallback
    num_cores = 1
    try:
        info = pltpu.get_tpu_info()
        vmem_cap = int(getattr(info, "vmem_capacity_bytes", 0) or vmem_cap)
        for attr in ("num_cores", "num_tensorcores", "tensorcore_count",
                     "core_count"):
            v = getattr(info, attr, None)
            if v:
                num_cores = int(v)
                break
    except Exception:
        pass

    # Leave Mosaic internal-scratch headroom below physical VMEM (v7x: 64 MiB/TC).
    vmem_limit = int(0.80 * vmem_cap)

    # --- row-tile sizing from the TOTAL in-kernel footprint ---
    # 2 inputs x 2 pipeline buffers at native dtype + block-sized f32 temporaries
    # (upcasts / exps / logs / contrib) that all live in VMEM, plus a ~4 MiB cap per
    # input buffer (already at HBM roofline for a streaming mem-bound kernel).
    n_f32_tmp = 6 if norm_type == "channel" else 3
    per_row_bytes = hw * (2 * 2 * itemsize + n_f32_tmp * 4)
    rows_by_input_cap = (4 << 20) // max(1, hw * itemsize)
    rows_by_total = int(0.6 * vmem_limit) // max(1, per_row_bytes)
    cap_rows = max(sub, min(rows_by_input_cap, rows_by_total) // sub * sub)
    # TODO(synk): for extreme H*W where even `sub` rows blow the budget, tile the
    # spatial axis with an online-softmax (flash-style) accumulation.

    grid_n = _cdiv(rows, cap_rows)
    # Split for multiple TensorCores only when the chip actually has them (v7x);
    # on single-TC v5e/v6e the grid is a serial loop and splitting only adds
    # per-step overhead.  Round to a multiple of num_cores to keep the shard balanced.
    if num_cores > 1 and rows >= 2 * num_cores * sub:
        grid_n = _round_up(max(grid_n, num_cores), num_cores)
    block_rows = max(sub, _round_up(_cdiv(rows, grid_n), sub))
    grid_n = _cdiv(rows, block_rows)   # every grid step overlaps the array

    kernel = functools.partial(
        _cwd_loss_kernel,
        norm_type=norm_type,
        divergence=divergence,
        temperature=float(temperature),
        rows=rows,
    )

    raw = pl.pallas_call(
        kernel,
        out_shape=jax.ShapeDtypeStruct((grid_n, 8, 128), jnp.float32),
        grid_spec=pltpu.PrefetchScalarGridSpec(
            num_scalar_prefetch=0,
            grid=(grid_n,),
            in_specs=[
                # Last block dim equals the full H*W axis -> no host padding needed.
                pl.BlockSpec((block_rows, hw), lambda i: (i, 0)),
                pl.BlockSpec((block_rows, hw), lambda i: (i, 0)),
            ],
            out_specs=pl.BlockSpec((1, 8, 128), lambda i: (i, 0, 0)),
        ),
        compiler_params=pltpu.CompilerParams(
            # If a v7x profile shows only one TC busy, switch to CORE_PARALLEL /
            # an explicit core_map; plain "parallel" is correct either way.
            dimension_semantics=("parallel",),
            vmem_limit_bytes=vmem_limit,
        ),
    )(s2, t2)

    loss = jnp.sum(raw) / divisor * (float(temperature) ** 2)
    return loss


if __name__ == "__main__":
    key = jax.random.PRNGKey(0)
    k1, k2 = jax.random.split(key)
    n, c, h, w = 2, 4, 16, 16
    preds_S = jax.random.normal(k1, (n, c, h, w), dtype=jnp.float32)
    preds_T = jax.random.normal(k2, (n, c, h, w), dtype=jnp.float32)

    # Default module config: CriterionCWD() -> norm_type='none', divergence='mse', T=1.0
    loss_none_mse = criterion_cwd(preds_S, preds_T, "none", "mse", 1.0)
    # Typical CWD config: channel softmax + KL with temperature
    loss_chan_kl = criterion_cwd(preds_S, preds_T, "channel", "kl", 4.0)
    loss_chan_mse = criterion_cwd(preds_S, preds_T, "channel", "mse", 1.0)
    loss_cmean_mse = criterion_cwd(preds_S, preds_T, "channel_mean", "mse", 1.0)
    # bf16 inputs (halved HBM traffic); math still f32 in-kernel.
    loss_chan_kl_bf16 = criterion_cwd(preds_S.astype(jnp.bfloat16),
                                      preds_T.astype(jnp.bfloat16),
                                      "channel", "kl", 4.0)
    # non-128-multiple spatial size -> exercises the ragged-lane (full-dim block) path.
    h2, w2 = 9, 9
    k3, k4 = jax.random.split(jax.random.PRNGKey(1))
    S2 = jax.random.normal(k3, (n, c, h2, w2), dtype=jnp.float32)
    T2 = jax.random.normal(k4, (n, c, h2, w2), dtype=jnp.float32)
    loss_chan_kl_pad = criterion_cwd(S2, T2, "channel", "kl", 4.0)
    # 'none' + 'kl' (needs positive inputs, same as the torch module).
    S3 = jnp.abs(preds_S) + 0.1
    T3 = jnp.abs(preds_T) + 0.1
    loss_none_kl = criterion_cwd(S3, T3, "none", "kl", 2.0)

    jax.block_until_ready((loss_none_mse, loss_chan_kl, loss_chan_mse,
                           loss_cmean_mse, loss_chan_kl_bf16, loss_chan_kl_pad,
                           loss_none_kl))

    # --- pure-JAX references ---
    ref_none_mse = jnp.sum((preds_S[0] - preds_T[0]) ** 2) / (n * h * w)

    def ref_channel_kl(S, T_arr, temp, nn_, cc_):
        log_s = jax.nn.log_softmax((S / temp).reshape(nn_, cc_, -1), axis=-1)
        soft_t = jax.nn.softmax((T_arr / temp).reshape(nn_, cc_, -1), axis=-1)
        return jnp.sum(soft_t * (jnp.log(soft_t) - log_s)) / (nn_ * cc_) * (temp ** 2)

    ref_chan_kl = ref_channel_kl(preds_S, preds_T, 4.0, n, c)

    soft_s1 = jax.nn.softmax(preds_S.reshape(n, c, -1), axis=-1)
    soft_t1 = jax.nn.softmax(preds_T.reshape(n, c, -1), axis=-1)
    ref_chan_mse = jnp.sum((soft_s1 - soft_t1) ** 2) / (n * c)

    sm = preds_S.reshape(n, c, -1).mean(-1)
    tm = preds_T.reshape(n, c, -1).mean(-1)
    ref_cmean_mse = jnp.sum((sm - tm) ** 2) / (n * c)

    ref_chan_kl_bf16 = ref_channel_kl(preds_S.astype(jnp.bfloat16).astype(jnp.float32),
                                      preds_T.astype(jnp.bfloat16).astype(jnp.float32),
                                      4.0, n, c)
    ref_chan_kl_pad = ref_channel_kl(S2, T2, 4.0, n, c)
    ref_none_kl = (jnp.sum(T3[0] * (jnp.log(T3[0]) - jnp.log(S3[0])))
                   / (n * h * w) * (2.0 ** 2))

    assert jnp.allclose(loss_none_mse, ref_none_mse, rtol=1e-5, atol=1e-5), (
        loss_none_mse, ref_none_mse)
    assert jnp.allclose(loss_chan_kl, ref_chan_kl, rtol=1e-5, atol=1e-5), (
        loss_chan_kl, ref_chan_kl)
    assert jnp.allclose(loss_chan_mse, ref_chan_mse, rtol=1e-5, atol=1e-6), (
        loss_chan_mse, ref_chan_mse)
    assert jnp.allclose(loss_cmean_mse, ref_cmean_mse, rtol=1e-5, atol=1e-6), (
        loss_cmean_mse, ref_cmean_mse)
    assert jnp.allclose(loss_chan_kl_bf16, ref_chan_kl_bf16, rtol=1e-3, atol=1e-4), (
        loss_chan_kl_bf16, ref_chan_kl_bf16)
    assert jnp.allclose(loss_chan_kl_pad, ref_chan_kl_pad, rtol=1e-5, atol=1e-5), (
        loss_chan_kl_pad, ref_chan_kl_pad)
    assert jnp.allclose(loss_none_kl, ref_none_kl, rtol=1e-5, atol=1e-5), (
        loss_none_kl, ref_none_kl)

    print("KERNEL_OK")
</pallas_src>

<mosaic_0001>
module attributes {stable_mosaic.version = 11 : i64} {
  func.func @_cwd_loss_kernel(%arg0: i32, %arg1: memref<8x256xf32, #tpu.memory_space<vmem>>, %arg2: memref<8x256xf32, #tpu.memory_space<vmem>>, %arg3: memref<1x8x128xf32, #tpu.memory_space<vmem>>) attributes {dimension_semantics = [#tpu.dimension_semantics<parallel>], iteration_bounds = array<i64: 1>, scalar_prefetch = 0 : i64, scratch_operands = 0 : i64, tpu.core_type = #tpu.core_type<tc>, window_params = [{transform_indices = @transform_0, window_bounds = array<i64: 8, 256>}, {transform_indices = @transform_1, window_bounds = array<i64: 8, 256>}, {transform_indices = @transform_2, window_bounds = array<i64: 1, 8, 128>}]} {
    %c0 = arith.constant 0 : index
    %c0_0 = arith.constant 0 : index
    %0 = vector.load %arg1[%c0, %c0_0] : memref<8x256xf32, #tpu.memory_space<vmem>>, vector<8x256xf32>
    %c0_1 = arith.constant 0 : index
    %c0_2 = arith.constant 0 : index
    %1 = vector.load %arg2[%c0_1, %c0_2] : memref<8x256xf32, #tpu.memory_space<vmem>>, vector<8x256xf32>
    %2 = tpu.iota {dimensions = array<i32: 0>} : vector<8x256xi32>
    %c8_i32 = arith.constant 8 : i32
    %3 = arith.muli %arg0, %c8_i32 : i32
    %4 = vector.broadcast %3 : i32 to vector<8x256xi32>
    %5 = arith.addi %4, %2 : vector<8x256xi32>
    %c4_i32 = arith.constant 4 : i32
    %6 = vector.broadcast %c4_i32 : i32 to vector<8x256xi32>
    %7 = arith.cmpi slt, %5, %6 : vector<8x256xi32>
    %cst = arith.constant 1.000000e+00 : f32
    %8 = vector.broadcast %cst : f32 to vector<8x256xf32>
    %9 = arith.select %7, %0, %8 : vector<8x256xi1>, vector<8x256xf32>
    %cst_3 = arith.constant 1.000000e+00 : f32
    %10 = vector.broadcast %cst_3 : f32 to vector<8x256xf32>
    %11 = arith.select %7, %1, %10 : vector<8x256xi1>, vector<8x256xf32>
    %12 = arith.subf %9, %11 : vector<8x256xf32>
    %13 = arith.mulf %12, %12 : vector<8x256xf32>
    %14 = vector.shape_cast %13 : vector<8x256xf32> to vector<1x8x256xf32>
    %cst_4 = arith.constant dense<0.000000e+00> : vector<1xf32>
    %15 = vector.multi_reduction <add>, %14, %cst_4 [1, 2] : vector<1x8x256xf32> to vector<1xf32>
    %16 = vector.shape_cast %15 : vector<1xf32> to vector<1x1x1xf32>
    %17 = vector.extract %16[0, 0, 0] : f32 from vector<1x1x1xf32>
    %18 = tpu.iota {dimensions = array<i32: 0>} : vector<8x128xi32>
    %19 = tpu.iota {dimensions = array<i32: 1>} : vector<8x128xi32>
    %c0_i32 = arith.constant 0 : i32
    %20 = vector.broadcast %c0_i32 : i32 to vector<8x128xi32>
    %21 = arith.cmpi eq, %18, %20 : vector<8x128xi32>
    %c0_i32_5 = arith.constant 0 : i32
    %22 = vector.broadcast %c0_i32_5 : i32 to vector<8x128xi32>
    %23 = arith.cmpi eq, %19, %22 : vector<8x128xi32>
    %24 = arith.andi %21, %23 : vector<8x128xi1>
    %cst_6 = arith.constant 0.000000e+00 : f32
    %25 = vector.broadcast %17 : f32 to vector<8x128xf32>
    %26 = vector.broadcast %cst_6 : f32 to vector<8x128xf32>
    %27 = arith.select %24, %25, %26 : vector<8x128xi1>, vector<8x128xf32>
    %c0_7 = arith.constant 0 : index
    %c0_8 = arith.constant 0 : index
    %c0_9 = arith.constant 0 : index
    %28 = vector.load %arg3[%c0_7, %c0_8, %c0_9] : memref<1x8x128xf32, #tpu.memory_space<vmem>>, vector<1x8x128xf32>
    %29 = vector.shape_cast %28 : vector<1x8x128xf32> to vector<8x128xf32>
    %30 = vector.shape_cast %27 : vector<8x128xf32> to vector<1x8x128xf32>
    tpu.vector_store %arg3[%c0_7, %c0_8, %c0_9], %30 {strides = array<i32>} : memref<1x8x128xf32, #tpu.memory_space<vmem>>, vector<1x8x128xf32>,
    return
  }
  func.func @transform_0(%arg0: i32) -> (i32, i32) {
    %c0_i32 = arith.constant 0 : i32
    %c0_i32_0 = arith.constant 0 : i32
    return %arg0, %c0_i32 : i32, i32
  }
  func.func @transform_1(%arg0: i32) -> (i32, i32) {
    %c0_i32 = arith.constant 0 : i32
    %c0_i32_0 = arith.constant 0 : i32
    return %arg0, %c0_i32 : i32, i32
  }
  func.func @transform_2(%arg0: i32) -> (i32, i32, i32) {
    %c0_i32 = arith.constant 0 : i32
    %c0_i32_0 = arith.constant 0 : i32
    %c0_i32_1 = arith.constant 0 : i32
    return %arg0, %c0_i32, %c0_i32_0 : i32, i32, i32
  }
}

</mosaic_0001>

<llo_original>
// kernel: tpu_custom_call.1
$region0: #{tpu_custom_call.1}
  #allocation0 [shape = 'u32[]', space=smem, size = 0x4, offset = 0x4, fixed_abs, tag = 'smem constant byte address 0x4 - core index']
  #allocation1 [shape = 'u32[144,128]{1,0:T(1,128)}', space=vmem, size = 0x12000, scoped, tag = 'internal scratch']
  %s0 = inlined_call_operand.hbm [shape: f32[8,256], index: 0, kind: input, shape index: {}]
  %s1 = inlined_call_operand.hbm [shape: f32[8,256], index: 1, kind: input, shape index: {}]
  %s2 = inlined_call_operand.hbm [shape: f32[1,8,128], index: 2, kind: output, shape index: {}]
  %s3 = sld [smem:[#allocation0]]
  $region26: #{tpu_custom_call.1} parent=0
    _
  %s5 = ssub.s32 1, %s3
  %s6 = scalar_select 0, %s5, %s3
  $region1: #{tpu_custom_call.1} parent=0
    #allocation2 [shape = 'u8[8192]{0}', space=vmem, size = 0x2000, scoped, tag = 'input window, operand 0, single buffered']
    #allocation3 [shape = 's32[1]{0}', space=sflag, size = 0x4, scoped, tag = 'scoped memory for tpu_custom_call.1']
    #allocation4 [shape = 's32[1]{0}', space=sflag, size = 0x4, scoped, tag = 'scoped memory for tpu_custom_call.1']
    #allocation5 [shape = 'u8[8192]{0}', space=vmem, size = 0x2000, scoped, tag = 'input window, operand 1, single buffered']
    #allocation6 [shape = 's32[1]{0}', space=sflag, size = 0x4, scoped, tag = 'scoped memory for tpu_custom_call.1']
    #allocation7 [shape = 'u8[4096]{0}', space=vmem, size = 0x1000, scoped, tag = 'output window, operand 0, single buffered']
    %7 = vsyncpa [#allocation3], 0
    %8 = vsyncpa [#allocation6], 0
    %9 = vsyncpa [#allocation4], 0
    // Predicated region
    $region2: #{tpu_custom_call.1} parent=1 // pred_check
      _
    $region3: #{tpu_custom_call.1} parent=1 // pred_check_branch
      %11 = sbr.rel (0) target = $region5
    $region4: #{tpu_custom_call.1} parent=1 // pred_region
      %s13 = ssub.s32 256, 256
      %14 = vsyncadd [#allocation3], %s13
      %s16 = sshll.u32 [#allocation2], 4
      %s17 = int_to_ptr.vmem [resolvable:$true] %s16
      %19 = dma.hbm_to_vmem [thread:$0]  %s0, 256, %s17, [#allocation3]
    $region5: #{tpu_custom_call.1} parent=1 // pred_fallthru
      _
    // Predicated region
    $region6: #{tpu_custom_call.1} parent=1 // pred_check
      _
    $region7: #{tpu_custom_call.1} parent=1 // pred_check_branch
      %21 = sbr.rel (0) target = $region9
    $region8: #{tpu_custom_call.1} parent=1 // pred_region
      %s23 = ssub.s32 256, 256
      %24 = vsyncadd [#allocation6], %s23
      %s26 = sshll.u32 [#allocation5], 4
      %s27 = int_to_ptr.vmem [resolvable:$true] %s26
      %29 = dma.hbm_to_vmem [thread:$0]  %s1, 256, %s27, [#allocation6]
    $region9: #{tpu_custom_call.1} parent=1 // pred_fallthru
      _
    // Predicated region
    $region10: #{tpu_custom_call.1} parent=1 // pred_check
      _
    $region11: #{tpu_custom_call.1} parent=1 // pred_check_branch
      %31 = sbr.rel (0) target = $region13
    $region12: #{tpu_custom_call.1} parent=1 // pred_region
      %32 = dma.done [#allocation3], 256
    $region13: #{tpu_custom_call.1} parent=1 // pred_fallthru
      _
    // Predicated region
    $region14: #{tpu_custom_call.1} parent=1 // pred_check
      _
    $region15: #{tpu_custom_call.1} parent=1 // pred_check_branch
      %34 = sbr.rel (0) target = $region17
    $region16: #{tpu_custom_call.1} parent=1 // pred_region
      %35 = dma.done [#allocation6], 256
    $region17: #{tpu_custom_call.1} parent=1 // pred_fallthru
      _
    %v36 = vld [vmem:[#allocation2] sm:$0xff]
    %v37 = vld [vmem:[#allocation2 + $0x8] sm:$0xff]
    %v38 = vld [vmem:[#allocation5] sm:$0xff]
    %v39 = vld [vmem:[#allocation5 + $0x8] sm:$0xff]
    %v40 = vlaneseq
    %v41 = vshrl.u32 %v40, 7
    %s42 = smul.u32 0, 8
    %v43 = vstv %s42
    %v44 = vadd.s32 %v43, %v41
    %vm45 = vcmp.lt.s32.totalorder %v44, 4
    %v46 = vsel %vm45, %v36, 1.0
    %v47 = vsel %vm45, %v37, 1.0
    %v48 = vsel %vm45, %v38, 1.0
    %v49 = vsel %vm45, %v39, 1.0
    %v50 = vsub.f32 %v46, %v48
    %v51 = vsub.f32 %v47, %v49
    %v52 = vmul.f32 %v50, %v50
    %v53 = vmul.f32 %v51, %v51
    %v54 = vadd.f32 %v52, %v53
    %55 = vadd.xlane.f32.xlu0 %v54
    %v56 = vpop.xlane.xlu0 %55
    %v57 = vrot.slane %v56, 4
    %v58 = vadd.f32 %v56, %v57
    %v59 = vrot.slane %v58, 2
    %v60 = vadd.f32 %v58, %v59
    %v61 = vrot.slane %v60, 1
    %v62 = vadd.f32 %v60, %v61
    %s63 = vtos %v62
    %v64 = vlaneseq
    %v65 = vand.u32 %v64, 127
    %vm66 = vcmp.eq.s32.totalorder %v41, 0
    %vm67 = vcmp.eq.s32.totalorder %v65, 0
    %vm68 = vmand %vm66, %vm67
    %v69 = vstv %s63
    %v70 = vsel %vm68, %v69, 0.0
    %71 = vst [vmem:[#allocation7] sm:$0xff] %v70
    // Predicated region
    $region18: #{tpu_custom_call.1} parent=1 // pred_check
      _
    $region19: #{tpu_custom_call.1} parent=1 // pred_check_branch
      %73 = sbr.rel (0) target = $region21
    $region20: #{tpu_custom_call.1} parent=1 // pred_region
      %s75 = ssub.s32 128, 128
      %76 = vsyncadd [#allocation4], %s75
      %s78 = sshll.u32 [#allocation7], 4
      %s79 = int_to_ptr.vmem [resolvable:$true] %s78
      %81 = dma.vmem_to_hbm [thread:$0]  %s79, 128, %s2, [#allocation4]
    $region21: #{tpu_custom_call.1} parent=1 // pred_fallthru
      _
    // Predicated region
    $region22: #{tpu_custom_call.1} parent=1 // pred_check
      _
    $region23: #{tpu_custom_call.1} parent=1 // pred_check_branch
      %83 = sbr.rel (0) target = $region25
    $region24: #{tpu_custom_call.1} parent=1 // pred_region
      %84 = dma.done [#allocation4], 128
    $region25: #{tpu_custom_call.1} parent=1 // pred_fallthru
      _
    %85 = vsyncpa [#allocation3], 1
    %86 = vsyncpa [#allocation6], 1
    %87 = vsyncpa [#allocation4], 1

</llo_original>
